<compile_context>
chip_gen: v7x
topology: tpu7x:2x2x1
jax: 0.10.0
libtpu: 0.0.40
codegen_flags: <defaults>
</compile_context>

<pallas_src>
import functools
import math

import numpy as np
import jax
import jax.numpy as jnp
from jax import lax
from jax.experimental import pallas as pl
from jax.experimental.pallas import tpu as pltpu

_HALF_LOG_2PI = 0.5 * math.log(2.0 * math.pi)
_CLIP_MIN = -10.0
_CLIP_MAX = 10.0

_NUM_SHARDS = 2  # v7x has 2 TensorCores; extra grid dim is harmless on v5e/v6e


def _nll_kernel(x_ref, mean_ref, inv_std_ref, out_ref, acc_ref, *,
                tb, batch, blocks_per_shard, need_mask):
    """Accumulates sum(0.5 * ((clean(x) - mean) * inv_std)^2) per shard."""
    s = pl.program_id(0)          # shard (parallel across cores on v7x)
    i = pl.program_id(1)          # batch-block within shard (reduction axis)

    @pl.when(i == 0)
    def _init():
        acc_ref[...] = jnp.zeros_like(acc_ref)

    x = x_ref[...].astype(jnp.float32)                 # (tb, dim)
    # nan_to_num: NaN -> 0.  (+/-inf are handled by the clip below:
    # clip(+inf) == clip(1e10) == 10, identically for -inf.)
    x = jnp.where(jnp.isnan(x), jnp.float32(0.0), x)
    x = jnp.clip(x, jnp.float32(_CLIP_MIN), jnp.float32(_CLIP_MAX))

    z = (x - mean_ref[...]) * inv_std_ref[...]         # (1,dim) broadcasts
    sq = jnp.float32(0.5) * (z * z)                    # (tb, dim)

    if need_mask:
        g = s * blocks_per_shard + i                   # global block index
        row = g * tb + lax.broadcasted_iota(jnp.int32, sq.shape, 0)
        sq = jnp.where(row < batch, sq, jnp.float32(0.0))

    # Fold the tb rows into the (8, dim) accumulator: sum over the leading
    # vreg-group axis is pure elementwise VPU adds (no XLU per step).
    acc_ref[...] += sq.reshape(tb // 8, 8, sq.shape[-1]).sum(axis=0)

    @pl.when(i == pl.num_programs(1) - 1)
    def _finalize():
        total = jnp.sum(acc_ref[...])                  # one XLU reduce / shard
        # Lane-dense write of the per-shard partial (wrapper reads [:, 0, 0]).
        out_ref[...] = jnp.full(out_ref.shape, total, dtype=out_ref.dtype)


def negative_gaussian_loss(x, mean, log_std, size):
    """Flatten to (B, dim), tile the batch axis, reduce to a scalar loss."""
    dim = int(np.prod(size))
    x2 = x.reshape(-1, dim)                       # keep original dtype (no upcast)
    batch = x2.shape[0]
    itemsize = np.dtype(x2.dtype).itemsize

    # Tile sizing: ~2 MiB per x buffer (x2 double-buffered ~4 MiB) -> safe for
    # the default scoped-VMEM limits on v5e/v6e and v7x's 64 MiB VMEM.
    target_bytes = 2 * 1024 * 1024
    tb = max(8, min(((target_bytes // max(1, dim * itemsize)) // 8) * 8, 512))
    b8 = -(-batch // 8) * 8                       # smallest multiple of 8 >= batch
    tb = min(tb, b8)

    chunk = tb * _NUM_SHARDS
    b_pad = -(-batch // chunk) * chunk
    blocks_per_shard = b_pad // chunk
    need_mask = (b_pad != batch)
    if need_mask:
        pad = jnp.zeros((b_pad - batch, dim), dtype=x2.dtype)
        x2 = jnp.concatenate([x2, pad], axis=0)

    mean2 = mean.reshape(1, dim).astype(jnp.float32)
    log_std2 = log_std.reshape(1, dim).astype(jnp.float32)
    inv_std2 = jnp.exp(-log_std2)                 # hoisted out of the kernel

    kernel = functools.partial(
        _nll_kernel, tb=tb, batch=batch,
        blocks_per_shard=blocks_per_shard, need_mask=need_mask)

    partials = pl.pallas_call(
        kernel,
        out_shape=jax.ShapeDtypeStruct((_NUM_SHARDS, 8, 128), jnp.float32),
        grid_spec=pltpu.PrefetchScalarGridSpec(
            num_scalar_prefetch=0,
            grid=(_NUM_SHARDS, blocks_per_shard),
            in_specs=[
                pl.BlockSpec((tb, dim),
                             lambda s, i: (s * blocks_per_shard + i, 0)),
                pl.BlockSpec((1, dim), lambda s, i: (0, 0)),   # mean
                pl.BlockSpec((1, dim), lambda s, i: (0, 0)),   # inv_std
            ],
            out_specs=pl.BlockSpec((1, 8, 128), lambda s, i: (s, 0, 0)),
            scratch_shapes=[pltpu.VMEM((8, dim), jnp.float32)],
        ),
        compiler_params=pltpu.CompilerParams(
            dimension_semantics=("parallel", "arbitrary"),
            vmem_limit_bytes=32 * 1024 * 1024,
        ),
        cost_estimate=pl.CostEstimate(
            flops=6 * b_pad * dim,
            transcendentals=0,
            bytes_accessed=b_pad * dim * itemsize + 2 * dim * 4
                           + _NUM_SHARDS * 8 * 128 * 4,
        ),
    )(x2, mean2, inv_std2)

    # Hoisted constant: each of the B valid rows contributes
    # sum_dim(log_std + 0.5*log(2*pi)) to -sum(log_prob).
    const = jnp.float32(batch) * (jnp.sum(log_std2)
                                  + jnp.float32(dim) * jnp.float32(_HALF_LOG_2PI))
    return jnp.sum(partials[:, 0, 0]) + const


def _reference(x, mean, log_std, size):
    """Pure-JAX reference mirroring the PyTorch module."""
    dim = int(np.prod(size))
    xr = jnp.nan_to_num(x.astype(jnp.float32), nan=0.0,
                        posinf=1.0e10, neginf=-1.0e10)
    xr = jnp.clip(xr, _CLIP_MIN, _CLIP_MAX).reshape(-1, dim)
    std = jnp.exp(log_std)
    logp = -0.5 * ((xr - mean) / std) ** 2 - log_std - _HALF_LOG_2PI
    per_row = jnp.sum(logp, axis=-1)
    return -jnp.sum(per_row, axis=-1)


if __name__ == "__main__":
    # Module config: size = (C, H, W) = (4, 16, 16), dim = 1024; batch = 2.
    size = (4, 16, 16)
    dim = int(np.prod(size))
    batch = 2

    key = jax.random.PRNGKey(0)
    x = jax.random.normal(key, (batch,) + size, dtype=jnp.float32)  # NCHW

    # Deterministic parameter init, exactly as in __init__: zeros.
    mean = jnp.zeros((dim,), dtype=jnp.float32)
    log_std = jnp.zeros((dim,), dtype=jnp.float32)

    out = negative_gaussian_loss(x, mean, log_std, size)
    out = jax.block_until_ready(out)

    ref = jax.block_until_ready(_reference(x, mean, log_std, size))
    np.testing.assert_allclose(np.asarray(out), np.asarray(ref),
                               rtol=1e-5, atol=1e-3)

    print("KERNEL_OK")
</pallas_src>

<mosaic_0001>
module attributes {stable_mosaic.version = 11 : i64} {
  func.func @_nll_kernel(%arg0: i32, %arg1: i32, %arg2: memref<8x1024xf32, #tpu.memory_space<vmem>>, %arg3: memref<1x1024xf32, #tpu.memory_space<vmem>>, %arg4: memref<1x1024xf32, #tpu.memory_space<vmem>>, %arg5: memref<1x8x128xf32, #tpu.memory_space<vmem>>, %arg6: memref<8x1024xf32, #tpu.memory_space<vmem>>) attributes {dimension_semantics = [#tpu.dimension_semantics<parallel>, #tpu.dimension_semantics<arbitrary>], iteration_bounds = array<i64: 2, 1>, scalar_prefetch = 0 : i64, scratch_operands = 1 : i64, tpu.core_type = #tpu.core_type<tc>, window_params = [{transform_indices = @transform_0, window_bounds = array<i64: 8, 1024>}, {pipeline_mode = #tpu.pipeline_mode<synchronous>, transform_indices = @transform_1, window_bounds = array<i64: 1, 1024>}, {pipeline_mode = #tpu.pipeline_mode<synchronous>, transform_indices = @transform_2, window_bounds = array<i64: 1, 1024>}, {transform_indices = @transform_3, window_bounds = array<i64: 1, 8, 128>}]} {
    %c0_i32 = arith.constant 0 : i32
    %0 = arith.cmpi eq, %arg1, %c0_i32 : i32
    %1 = arith.extui %0 : i1 to i32
    %c0_i32_0 = arith.constant 0 : i32
    %2 = arith.cmpi ne, %1, %c0_i32_0 : i32
    scf.if %2 {
      %cst_17 = arith.constant 0.000000e+00 : f32
      %38 = vector.broadcast %cst_17 : f32 to vector<8x1024xf32>
      %c0_18 = arith.constant 0 : index
      %c0_19 = arith.constant 0 : index
      %39 = vector.load %arg6[%c0_18, %c0_19] : memref<8x1024xf32, #tpu.memory_space<vmem>>, vector<8x1024xf32>
      tpu.vector_store %arg6[%c0_18, %c0_19], %38 {strides = array<i32>} : memref<8x1024xf32, #tpu.memory_space<vmem>>, vector<8x1024xf32>,
    } else {
    }
    %c0 = arith.constant 0 : index
    %c0_1 = arith.constant 0 : index
    %3 = vector.load %arg2[%c0, %c0_1] : memref<8x1024xf32, #tpu.memory_space<vmem>>, vector<8x1024xf32>
    %4 = arith.cmpf one, %3, %3 : vector<8x1024xf32>
    %cst = arith.constant 0.000000e+00 : f32
    %5 = vector.broadcast %cst : f32 to vector<8x1024xf32>
    %6 = arith.select %4, %5, %3 : vector<8x1024xi1>, vector<8x1024xf32>
    %cst_2 = arith.constant -1.000000e+01 : f32
    %cst_3 = arith.constant 1.000000e+01 : f32
    %7 = vector.broadcast %cst_2 : f32 to vector<8x1024xf32>
    %8 = arith.maximumf %7, %6 : vector<8x1024xf32>
    %9 = vector.broadcast %cst_3 : f32 to vector<8x1024xf32>
    %10 = arith.minimumf %9, %8 : vector<8x1024xf32>
    %c0_4 = arith.constant 0 : index
    %c0_5 = arith.constant 0 : index
    %11 = vector.load %arg3[%c0_4, %c0_5] : memref<1x1024xf32, #tpu.memory_space<vmem>>, vector<1x1024xf32>
    %12 = vector.broadcast %11 : vector<1x1024xf32> to vector<8x1024xf32>
    %13 = arith.subf %10, %12 : vector<8x1024xf32>
    %c0_6 = arith.constant 0 : index
    %c0_7 = arith.constant 0 : index
    %14 = vector.load %arg4[%c0_6, %c0_7] : memref<1x1024xf32, #tpu.memory_space<vmem>>, vector<1x1024xf32>
    %15 = vector.broadcast %14 : vector<1x1024xf32> to vector<8x1024xf32>
    %16 = arith.mulf %13, %15 : vector<8x1024xf32>
    %17 = arith.mulf %16, %16 : vector<8x1024xf32>
    %cst_8 = arith.constant 5.000000e-01 : f32
    %18 = vector.broadcast %cst_8 : f32 to vector<8x1024xf32>
    %19 = arith.mulf %18, %17 : vector<8x1024xf32>
    %c1_i32 = arith.constant 1 : i32
    %20 = arith.muli %arg0, %c1_i32 : i32
    %21 = arith.addi %20, %arg1 : i32
    %c8_i32 = arith.constant 8 : i32
    %22 = arith.muli %21, %c8_i32 : i32
    %23 = tpu.iota {dimensions = array<i32: 0>} : vector<8x1024xi32>
    %24 = vector.broadcast %22 : i32 to vector<8x1024xi32>
    %25 = arith.addi %24, %23 : vector<8x1024xi32>
    %c2_i32 = arith.constant 2 : i32
    %26 = vector.broadcast %c2_i32 : i32 to vector<8x1024xi32>
    %27 = arith.cmpi slt, %25, %26 : vector<8x1024xi32>
    %cst_9 = arith.constant 0.000000e+00 : f32
    %28 = vector.broadcast %cst_9 : f32 to vector<8x1024xf32>
    %29 = arith.select %27, %19, %28 : vector<8x1024xi1>, vector<8x1024xf32>
    %c0_10 = arith.constant 0 : index
    %c0_11 = arith.constant 0 : index
    %30 = vector.load %arg6[%c0_10, %c0_11] : memref<8x1024xf32, #tpu.memory_space<vmem>>, vector<8x1024xf32>
    %31 = vector.shape_cast %29 : vector<8x1024xf32> to vector<1x8x1024xf32>
    %cst_12 = arith.constant dense<0.000000e+00> : vector<8x1024xf32>
    %32 = vector.multi_reduction <add>, %31, %cst_12 [0] : vector<1x8x1024xf32> to vector<8x1024xf32>
    %33 = arith.addf %30, %32 : vector<8x1024xf32>
    %c0_13 = arith.constant 0 : index
    %c0_14 = arith.constant 0 : index
    %34 = vector.load %arg6[%c0_13, %c0_14] : memref<8x1024xf32, #tpu.memory_space<vmem>>, vector<8x1024xf32>
    tpu.vector_store %arg6[%c0_13, %c0_14], %33 {strides = array<i32>} : memref<8x1024xf32, #tpu.memory_space<vmem>>, vector<8x1024xf32>,
    %c0_i32_15 = arith.constant 0 : i32
    %35 = arith.cmpi eq, %arg1, %c0_i32_15 : i32
    %36 = arith.extui %35 : i1 to i32
    %c0_i32_16 = arith.constant 0 : i32
    %37 = arith.cmpi ne, %36, %c0_i32_16 : i32
    scf.if %37 {
      %c0_17 = arith.constant 0 : index
      %c0_18 = arith.constant 0 : index
      %38 = vector.load %arg6[%c0_17, %c0_18] : memref<8x1024xf32, #tpu.memory_space<vmem>>, vector<8x1024xf32>
      %39 = vector.shape_cast %38 : vector<8x1024xf32> to vector<1x8x1024xf32>
      %cst_19 = arith.constant dense<0.000000e+00> : vector<1xf32>
      %40 = vector.multi_reduction <add>, %39, %cst_19 [1, 2] : vector<1x8x1024xf32> to vector<1xf32>
      %41 = vector.shape_cast %40 : vector<1xf32> to vector<1x1x1xf32>
      %42 = vector.extract %41[0, 0, 0] : f32 from vector<1x1x1xf32>
      %43 = vector.broadcast %42 : f32 to vector<1x8x128xf32>
      %c0_20 = arith.constant 0 : index
      %c0_21 = arith.constant 0 : index
      %c0_22 = arith.constant 0 : index
      %44 = vector.load %arg5[%c0_20, %c0_21, %c0_22] : memref<1x8x128xf32, #tpu.memory_space<vmem>>, vector<1x8x128xf32>
      tpu.vector_store %arg5[%c0_20, %c0_21, %c0_22], %43 {strides = array<i32>} : memref<1x8x128xf32, #tpu.memory_space<vmem>>, vector<1x8x128xf32>,
    } else {
    }
    return
  }
  func.func @transform_0(%arg0: i32, %arg1: i32) -> (i32, i32) {
    %c1_i32 = arith.constant 1 : i32
    %0 = arith.muli %arg0, %c1_i32 : i32
    %1 = arith.addi %0, %arg1 : i32
    %c0_i32 = arith.constant 0 : i32
    %c0_i32_0 = arith.constant 0 : i32
    return %1, %c0_i32 : i32, i32
  }
  func.func @transform_1(%arg0: i32, %arg1: i32) -> (i32, i32) {
    %c0_i32 = arith.constant 0 : i32
    %c0_i32_0 = arith.constant 0 : i32
    %c0_i32_1 = arith.constant 0 : i32
    return %c0_i32, %c0_i32_0 : i32, i32
  }
  func.func @transform_2(%arg0: i32, %arg1: i32) -> (i32, i32) {
    %c0_i32 = arith.constant 0 : i32
    %c0_i32_0 = arith.constant 0 : i32
    %c0_i32_1 = arith.constant 0 : i32
    return %c0_i32, %c0_i32_0 : i32, i32
  }
  func.func @transform_3(%arg0: i32, %arg1: i32) -> (i32, i32, i32) {
    %c0_i32 = arith.constant 0 : i32
    %c0_i32_0 = arith.constant 0 : i32
    %c0_i32_1 = arith.constant 0 : i32
    return %arg0, %c0_i32, %c0_i32_0 : i32, i32, i32
  }
}

</mosaic_0001>

<llo_original>
// kernel: tpu_custom_call.1
$region0: #{tpu_custom_call.1}
  #allocation0 [shape = 'u32[]', space=smem, size = 0x4, offset = 0x4, fixed_abs, tag = 'smem constant byte address 0x4 - core index']
  #allocation1 [shape = 'u32[144,128]{1,0:T(1,128)}', space=vmem, size = 0x12000, scoped, tag = 'internal scratch']
  #allocation2 [shape = 'f32[8,1024]{1,0:T(8,128)}', space=vmem, size = 0x8000, scoped, tag = 'scratch operand']
  %s0 = inlined_call_operand.hbm [shape: f32[16,1024], index: 0, kind: input, shape index: {}]
  %s1 = inlined_call_operand.hbm [shape: f32[1,1024], index: 1, kind: input, shape index: {}]
  %s2 = inlined_call_operand.hbm [shape: f32[1,1024], index: 2, kind: input, shape index: {}]
  %s3 = inlined_call_operand.hbm [shape: f32[2,8,128], index: 3, kind: output, shape index: {}]
  %s4 = sld [smem:[#allocation0]]
  $region65: #{tpu_custom_call.1} parent=0
    _
  %s6 = ssub.s32 1, %s4
  %s7 = scalar_select 0, %s6, %s4
  $region1: #{tpu_custom_call.1} parent=0
    #allocation3 [shape = 'u8[65536]{0}', space=vmem, size = 0x10000, scoped, tag = 'input window, operand 0']
    #allocation4 [shape = 's32[2]{0}', space=sflag, size = 0x8, scoped, tag = 'scoped memory for tpu_custom_call.1']
    #allocation5 [shape = 's32[2]{0}', space=sflag, size = 0x8, scoped, tag = 'scoped memory for tpu_custom_call.1']
    #allocation6 [shape = 'u8[4096]{0}', space=vmem, size = 0x1000, scoped, tag = 'input window, operand 1, single buffered']
    #allocation7 [shape = 's32[1]{0}', space=sflag, size = 0x4, scoped, tag = 'scoped memory for tpu_custom_call.1']
    #allocation8 [shape = 'u8[4096]{0}', space=vmem, size = 0x1000, scoped, tag = 'input window, operand 2, single buffered']
    #allocation9 [shape = 'u8[8192]{0}', space=vmem, size = 0x2000, scoped, tag = 'output window, operand 0']
    %8 = vsyncpa [#allocation4], 0
    %s9 = scalar_lea.sflag [#allocation4], 1
    %10 = vsyncpa %s9, 0
    %11 = vsyncpa [#allocation7], 0
    %12 = vsyncpa [#allocation5], 0
    %s13 = scalar_lea.sflag [#allocation5], 1
    %14 = vsyncpa %s13, 0
    loop: start=0, step=1, limit=4
    $region2: #{tpu_custom_call.1} parent=1 // loop_pre_header
      _
    $region3: #{tpu_custom_call.1} parent=1 // loop_header
      %s16 = sphi 0, %s20
      %p17 = scmp.ge.s32.totalorder %s16, 4
      %s23 = sphi 0, %s35
      %s24 = sphi 0, %s31
      %s25 = sphi 0, %s23
      %s26 = sphi 0, %s24
      %s27 = sphi 0, %s25
      %s28 = sphi 0, %s26
      %s40 = sphi 0, %s42
      %s43 = sphi 0, %s40
      %s44 = sphi 0, %s43
      %s60 = sphi 0, %s44
      %s64 = sphi 0, %s64
      %s66 = sphi 0, %s64
      %s67 = sphi 0, %s66
      %s81 = sphi 0, %s67
      %s85 = sphi 0, %s85
      %s87 = sphi 0, %s85
      %s88 = sphi 0, %s87
      %s102 = sphi 0, %s88
      %s108 = sphi 0, %s110
      %s111 = sphi 0, %s108
      %s112 = sphi 0, %s111
      %s128 = sphi 0, %s112
    $region4: #{tpu_custom_call.1} parent=1 // loop_header_branch
      %19 = sbr.rel (%p17) target = $region8
    $region5: #{tpu_custom_call.1} parent=1 // loop_body
      %s21 = ssub.s32 %s16, 1
      %s22 = ssub.s32 %s16, 2
      %s29 = sadd.s32 1, %s24
      %p30 = scmp.ge.s32.totalorder %s29, 1
      %s31 = scalar_select %p30, 0, %s29
      %s32 = sadd.s32 1, %s23
      %s33 = scalar_select %p30, %s32, %s23
      %p34 = scmp.ge.s32.totalorder %s33, 2
      %s35 = scalar_select %p34, 0, %s33
      %s36 = sadd.s32 %s23, %s24
      %s37 = sadd.s32 %s35, %s31
      %s38 = ssub.s32 %s36, %s37
      %p39 = scmp.eq.s32.totalorder %s38, 0
      %s41 = sadd.s32 %s40, 1
      %s42 = scalar_select %p39, %s40, %s41
      %p45 = pneg %p39
      %p46 = scmp.eq.s32.totalorder %s16, 1
      %p47 = por %p45, %p46
      %p48 = scmp.ne.s32.totalorder %s40, %s43
      %p49 = scmp.eq.s32.totalorder %s16, 0
      %p50 = por %p48, %p49
      %p51 = scmp.ne.s32.totalorder %s40, %s43
      %p52 = scmp.eq.s32.totalorder %s21, 1
      %p53 = por %p51, %p52
      %p54 = scmp.ne.s32.totalorder %s43, %s44
      %p55 = scmp.eq.s32.totalorder %s21, 0
      %p56 = por %p54, %p55
      %p57 = scmp.ne.s32.totalorder %s43, %s44
      %p58 = scmp.eq.s32.totalorder %s22, 1
      %p59 = por %p57, %p58
      %p61 = scmp.ne.s32.totalorder %s44, %s60
      %p62 = scmp.eq.s32.totalorder %s22, 0
      %p63 = por %p61, %p62
      %s65 = sadd.s32 %s64, 1
      %p68 = scmp.eq.s32.totalorder %s16, 1
      %p69 = scmp.ne.s32.totalorder %s64, %s66
      %p70 = scmp.eq.s32.totalorder %s16, 0
      %p71 = por %p69, %p70
      %p72 = scmp.ne.s32.totalorder %s64, %s66
      %p73 = scmp.eq.s32.totalorder %s21, 1
      %p74 = por %p72, %p73
      %p75 = scmp.ne.s32.totalorder %s66, %s67
      %p76 = scmp.eq.s32.totalorder %s21, 0
      %p77 = por %p75, %p76
      %p78 = scmp.ne.s32.totalorder %s66, %s67
      %p79 = scmp.eq.s32.totalorder %s22, 1
      %p80 = por %p78, %p79
      %p82 = scmp.ne.s32.totalorder %s67, %s81
      %p83 = scmp.eq.s32.totalorder %s22, 0
      %p84 = por %p82, %p83
      %s86 = sadd.s32 %s85, 1
      %p89 = scmp.eq.s32.totalorder %s16, 1
      %p90 = scmp.ne.s32.totalorder %s85, %s87
      %p91 = scmp.eq.s32.totalorder %s16, 0
      %p92 = por %p90, %p91
      %p93 = scmp.ne.s32.totalorder %s85, %s87
      %p94 = scmp.eq.s32.totalorder %s21, 1
      %p95 = por %p93, %p94
      %p96 = scmp.ne.s32.totalorder %s87, %s88
      %p97 = scmp.eq.s32.totalorder %s21, 0
      %p98 = por %p96, %p97
      %p99 = scmp.ne.s32.totalorder %s87, %s88
      %p100 = scmp.eq.s32.totalorder %s22, 1
      %p101 = por %p99, %p100
      %p103 = scmp.ne.s32.totalorder %s88, %s102
      %p104 = scmp.eq.s32.totalorder %s22, 0
      %p105 = por %p103, %p104
      %s106 = ssub.s32 %s23, %s35
      %p107 = scmp.eq.s32.totalorder %s106, 0
      %s109 = sadd.s32 %s108, 1
      %s110 = scalar_select %p107, %s108, %s109
      %p113 = pneg %p107
      %p114 = scmp.eq.s32.totalorder %s16, 1
      %p115 = por %p113, %p114
      %p116 = scmp.ne.s32.totalorder %s108, %s111
      %p117 = scmp.eq.s32.totalorder %s16, 0
      %p118 = por %p116, %p117
      %p119 = scmp.ne.s32.totalorder %s108, %s111
      %p120 = scmp.eq.s32.totalorder %s21, 1
      %p121 = por %p119, %p120
      %p122 = scmp.ne.s32.totalorder %s111, %s112
      %p123 = scmp.eq.s32.totalorder %s21, 0
      %p124 = por %p122, %p123
      %p125 = scmp.ne.s32.totalorder %s111, %s112
      %p126 = scmp.eq.s32.totalorder %s22, 1
      %p127 = por %p125, %p126
      %p129 = scmp.ne.s32.totalorder %s112, %s128
      %p130 = scmp.eq.s32.totalorder %s22, 0
      %p131 = por %p129, %p130
      %p132 = scmp.le.s32.totalorder 1, %s16
      %p133 = scmp.lt.s32.totalorder %s16, 3
      %p134 = pnand %p132, %p133
      %p135 = pneg %p134
      // Predicated region
      $region9: #{tpu_custom_call.1} parent=5 // pred_check
        _
      $region10: #{tpu_custom_call.1} parent=5 // pred_check_branch
        %137 = sbr.rel (%p134) target = $region12
      $region11: #{tpu_custom_call.1} parent=5 // pred_region
        %s138 = ssub.s32 %s16, 1
        // Predicated region
        $region13: #{tpu_custom_call.1} parent=11 // pred_check
          %p139 = pneg %p77
        $region14: #{tpu_custom_call.1} parent=11 // pred_check_branch
          %141 = sbr.rel (%p139) target = $region16
        $region15: #{tpu_custom_call.1} parent=11 // pred_region
          %s143 = ssub.s32 128, 128
          %144 = vsyncadd [#allocation7], %s143
          %s146 = sshll.u32 [#allocation6], 4
          %s147 = int_to_ptr.vmem [resolvable:$true] %s146
          %149 = dma.hbm_to_vmem [thread:$0]  %s1, 128, %s147, [#allocation7]
        $region16: #{tpu_custom_call.1} parent=11 // pred_fallthru
          _
        // Predicated region
        $region17: #{tpu_custom_call.1} parent=11 // pred_check
          %p150 = pneg %p98
        $region18: #{tpu_custom_call.1} parent=11 // pred_check_branch
          %152 = sbr.rel (%p150) target = $region20
        $region19: #{tpu_custom_call.1} parent=11 // pred_region
          %s154 = ssub.s32 128, 128
          %155 = vsyncadd [#allocation7], %s154
          %s157 = sshll.u32 [#allocation8], 4
          %s158 = int_to_ptr.vmem [resolvable:$true] %s157
          %160 = dma.hbm_to_vmem [thread:$0]  %s2, 128, %s158, [#allocation7]
        $region20: #{tpu_custom_call.1} parent=11 // pred_fallthru
          _
      $region12: #{tpu_custom_call.1} parent=5 // pred_fallthru
        _
      %p161 = scmp.lt.s32.totalorder %s16, 2
      // Predicated region
      $region21: #{tpu_custom_call.1} parent=5 // pred_check
        %p162 = pneg %p161
      $region22: #{tpu_custom_call.1} parent=5 // pred_check_branch
        %164 = sbr.rel (%p162) target = $region24
      $region23: #{tpu_custom_call.1} parent=5 // pred_region
        // Predicated region
        $region25: #{tpu_custom_call.1} parent=23 // pred_check
          %p165 = pneg %p50
        $region26: #{tpu_custom_call.1} parent=23 // pred_check_branch
          %167 = sbr.rel (%p165) target = $region28
        $region27: #{tpu_custom_call.1} parent=23 // pred_region
          %s168 = sand.u32 %s40, 1
          %s169 = scalar_lea.sflag [#allocation4], %s168
          %s170 = sand.u32 %s40, 1
          %s171 = smul.addr %s170, 64
          %s172 = scalar_lea.vmem [#allocation3], %s171
          %s173 = sadd.s32 %s23, %s24
          %s175 = ssub.s32 1024, 1024
          %176 = vsyncadd %s169, %s175
          %s177 = smul.addr %s173, 8
          %s178 = smul.addr %s177, 128
          %s179 = scalar_lea.hbm %s0, %s178
          %s181 = sshll.u32 %s172, 4
          %s182 = int_to_ptr.vmem [resolvable:$true] %s181
          %184 = dma.hbm_to_vmem [thread:$0]  %s179, 1024, %s182, %s169
        $region28: #{tpu_custom_call.1} parent=23 // pred_fallthru
          _
      $region24: #{tpu_custom_call.1} parent=5 // pred_fallthru
        _
      %p185 = scmp.le.s32.totalorder 1, %s16
      %p186 = scmp.lt.s32.totalorder %s16, 3
      %p187 = pnand %p185, %p186
      %p188 = pneg %p187
      // Predicated region
      $region29: #{tpu_custom_call.1} parent=5 // pred_check
        _
      $region30: #{tpu_custom_call.1} parent=5 // pred_check_branch
        %190 = sbr.rel (%p187) target = $region32
      $region31: #{tpu_custom_call.1} parent=5 // pred_region
        %s191 = ssub.s32 %s16, 1
        %s192 = sand.u32 %s43, 1
        %s193 = scalar_lea.sflag [#allocation4], %s192
        %s194 = sand.u32 %s43, 1
        %s195 = smul.addr %s194, 64
        %s196 = scalar_lea.vmem [#allocation3], %s195
        // Predicated region
        $region33: #{tpu_custom_call.1} parent=31 // pred_check
          %p197 = pneg %p56
        $region34: #{tpu_custom_call.1} parent=31 // pred_check_branch
          %199 = sbr.rel (%p197) target = $region36
        $region35: #{tpu_custom_call.1} parent=31 // pred_region
          %200 = dma.done %s193, 1024
        $region36: #{tpu_custom_call.1} parent=31 // pred_fallthru
          _
        // Predicated region
        $region37: #{tpu_custom_call.1} parent=31 // pred_check
          %p201 = pneg %p77
        $region38: #{tpu_custom_call.1} parent=31 // pred_check_branch
          %203 = sbr.rel (%p201) target = $region40
        $region39: #{tpu_custom_call.1} parent=31 // pred_region
          %204 = dma.done [#allocation7], 128
        $region40: #{tpu_custom_call.1} parent=31 // pred_fallthru
          _
        // Predicated region
        $region41: #{tpu_custom_call.1} parent=31 // pred_check
          %p205 = pneg %p98
        $region42: #{tpu_custom_call.1} parent=31 // pred_check_branch
          %207 = sbr.rel (%p205) target = $region44
        $region43: #{tpu_custom_call.1} parent=31 // pred_region
          %208 = dma.done [#allocation7], 128
        $region44: #{tpu_custom_call.1} parent=31 // pred_fallthru
          _
        %s209 = sand.u32 %s43, 1
        %s210 = scalar_lea.sflag [#allocation4], %s209
        %s211 = sand.u32 %s43, 1
        %s212 = smul.addr %s211, 64
        %s213 = scalar_lea.vmem [#allocation3], %s212
        %p214 = pneg %p56
        %p215 = pneg %p53
        %p216 = pneg %p77
        %p217 = pneg %p74
        %p218 = pneg %p98
        %p219 = pneg %p95
        %p220 = pneg %p124
        %p221 = pneg %p121
        %s222 = sand.u32 %s111, 1
        %s223 = scalar_lea.sflag [#allocation5], %s222
        %s224 = sand.u32 %s111, 1
        %s225 = smul.addr %s224, 8
        %s226 = scalar_lea.vmem [#allocation9], %s225
        %s227 = sadd.s32 %s25, %s26
        %p228 = scmp.eq.s32.totalorder %s26, 0
        // Predicated region
        $region45: #{tpu_custom_call.1} parent=31 // pred_check
          %p229 = pneg %p228
        $region46: #{tpu_custom_call.1} parent=31 // pred_check_branch
          %231 = sbr.rel (%p229) target = $region48
        $region47: #{tpu_custom_call.1} parent=31 // pred_region
          %232 = vst [vmem:[#allocation2] sm:$0xff] 0.0
          %233 = vst [vmem:[#allocation2 + $0x8] sm:$0xff] 0.0
          %234 = vst [vmem:[#allocation2 + $0x10] sm:$0xff] 0.0
          %235 = vst [vmem:[#allocation2 + $0x18] sm:$0xff] 0.0
          %236 = vst [vmem:[#allocation2 + $0x20] sm:$0xff] 0.0
          %237 = vst [vmem:[#allocation2 + $0x28] sm:$0xff] 0.0
          %238 = vst [vmem:[#allocation2 + $0x30] sm:$0xff] 0.0
          %239 = vst [vmem:[#allocation2 + $0x38] sm:$0xff] 0.0
        $region48: #{tpu_custom_call.1} parent=31 // pred_fallthru
          _
        %v240 = vld [vmem:[%s196] sm:$0xff]
        %v241 = vld [vmem:[%s196 + $0x8] sm:$0xff]
        %v242 = vld [vmem:[%s196 + $0x10] sm:$0xff]
        %v243 = vld [vmem:[%s196 + $0x18] sm:$0xff]
        %v244 = vld [vmem:[%s196 + $0x20] sm:$0xff]
        %v245 = vld [vmem:[%s196 + $0x28] sm:$0xff]
        %v246 = vld [vmem:[%s196 + $0x30] sm:$0xff]
        %v247 = vld [vmem:[%s196 + $0x38] sm:$0xff]
        %vm248 = vcmp.ne.f32.partialorder %v240, %v240
        %vm249 = vcmp.ne.f32.partialorder %v241, %v241
        %vm250 = vcmp.ne.f32.partialorder %v242, %v242
        %vm251 = vcmp.ne.f32.partialorder %v243, %v243
        %vm252 = vcmp.ne.f32.partialorder %v244, %v244
        %vm253 = vcmp.ne.f32.partialorder %v245, %v245
        %vm254 = vcmp.ne.f32.partialorder %v246, %v246
        %vm255 = vcmp.ne.f32.partialorder %v247, %v247
        %v256 = vsel %vm248, 0.0, %v240
        %v257 = vsel %vm249, 0.0, %v241
        %v258 = vsel %vm250, 0.0, %v242
        %v259 = vsel %vm251, 0.0, %v243
        %v260 = vsel %vm252, 0.0, %v244
        %v261 = vsel %vm253, 0.0, %v245
        %v262 = vsel %vm254, 0.0, %v246
        %v263 = vsel %vm255, 0.0, %v247
        %v264 = vmax.f32 %v256, -10.0
        %v265 = vmax.f32 %v257, -10.0
        %v266 = vmax.f32 %v258, -10.0
        %v267 = vmax.f32 %v259, -10.0
        %v268 = vmax.f32 %v260, -10.0
        %v269 = vmax.f32 %v261, -10.0
        %v270 = vmax.f32 %v262, -10.0
        %v271 = vmax.f32 %v263, -10.0
        %v272 = vmin.f32 %v264, 10.0
        %v273 = vmin.f32 %v265, 10.0
        %v274 = vmin.f32 %v266, 10.0
        %v275 = vmin.f32 %v267, 10.0
        %v276 = vmin.f32 %v268, 10.0
        %v277 = vmin.f32 %v269, 10.0
        %v278 = vmin.f32 %v270, 10.0
        %v279 = vmin.f32 %v271, 10.0
        %v280 = vld [vmem:[#allocation6] sm:$0xff]
        %v282 = vlaneseq
        %v283 = vshrl.u32 %v282, 7
        %v284 = vsub.s32 0, %v283
        %v285 = vrot.slane %v280, %v284
        %v286 = vlaneseq
        %v287 = vshrl.u32 %v286, 7
        %v288 = vsub.s32 1, %v287
        %v289 = vrot.slane %v280, %v288
        %v290 = vlaneseq
        %v291 = vshrl.u32 %v290, 7
        %v292 = vsub.s32 2, %v291
        %v293 = vrot.slane %v280, %v292
        %v294 = vlaneseq
        %v295 = vshrl.u32 %v294, 7
        %v296 = vsub.s32 3, %v295
        %v297 = vrot.slane %v280, %v296
        %v298 = vlaneseq
        %v299 = vshrl.u32 %v298, 7
        %v300 = vsub.s32 4, %v299
        %v301 = vrot.slane %v280, %v300
        %v302 = vlaneseq
        %v303 = vshrl.u32 %v302, 7
        %v304 = vsub.s32 5, %v303
        %v305 = vrot.slane %v280, %v304
        %v306 = vlaneseq
        %v307 = vshrl.u32 %v306, 7
        %v308 = vsub.s32 6, %v307
        %v309 = vrot.slane %v280, %v308
        %v310 = vlaneseq
        %v311 = vshrl.u32 %v310, 7
        %v312 = vsub.s32 7, %v311
        %v313 = vrot.slane %v280, %v312
        %v322 = vsub.f32 %v272, %v285
        %v323 = vsub.f32 %v273, %v289
        %v324 = vsub.f32 %v274, %v293
        %v325 = vsub.f32 %v275, %v297
        %v326 = vsub.f32 %v276, %v301
        %v327 = vsub.f32 %v277, %v305
        %v328 = vsub.f32 %v278, %v309
        %v329 = vsub.f32 %v279, %v313
        %v330 = vld [vmem:[#allocation8] sm:$0xff]
        %v332 = vlaneseq
        %v333 = vshrl.u32 %v332, 7
        %v334 = vsub.s32 0, %v333
        %v335 = vrot.slane %v330, %v334
        %v336 = vlaneseq
        %v337 = vshrl.u32 %v336, 7
        %v338 = vsub.s32 1, %v337
        %v339 = vrot.slane %v330, %v338
        %v340 = vlaneseq
        %v341 = vshrl.u32 %v340, 7
        %v342 = vsub.s32 2, %v341
        %v343 = vrot.slane %v330, %v342
        %v344 = vlaneseq
        %v345 = vshrl.u32 %v344, 7
        %v346 = vsub.s32 3, %v345
        %v347 = vrot.slane %v330, %v346
        %v348 = vlaneseq
        %v349 = vshrl.u32 %v348, 7
        %v350 = vsub.s32 4, %v349
        %v351 = vrot.slane %v330, %v350
        %v352 = vlaneseq
        %v353 = vshrl.u32 %v352, 7
        %v354 = vsub.s32 5, %v353
        %v355 = vrot.slane %v330, %v354
        %v356 = vlaneseq
        %v357 = vshrl.u32 %v356, 7
        %v358 = vsub.s32 6, %v357
        %v359 = vrot.slane %v330, %v358
        %v360 = vlaneseq
        %v361 = vshrl.u32 %v360, 7
        %v362 = vsub.s32 7, %v361
        %v363 = vrot.slane %v330, %v362
        %v372 = vmul.f32 %v322, %v335
        %v373 = vmul.f32 %v323, %v339
        %v374 = vmul.f32 %v324, %v343
        %v375 = vmul.f32 %v325, %v347
        %v376 = vmul.f32 %v326, %v351
        %v377 = vmul.f32 %v327, %v355
        %v378 = vmul.f32 %v328, %v359
        %v379 = vmul.f32 %v329, %v363
        %v380 = vmul.f32 %v372, %v372
        %v381 = vmul.f32 %v373, %v373
        %v382 = vmul.f32 %v374, %v374
        %v383 = vmul.f32 %v375, %v375
        %v384 = vmul.f32 %v376, %v376
        %v385 = vmul.f32 %v377, %v377
        %v386 = vmul.f32 %v378, %v378
        %v387 = vmul.f32 %v379, %v379
        %v388 = vmul.f32 %v380, 0.5
        %v389 = vmul.f32 %v381, 0.5
        %v390 = vmul.f32 %v382, 0.5
        %v391 = vmul.f32 %v383, 0.5
        %v392 = vmul.f32 %v384, 0.5
        %v393 = vmul.f32 %v385, 0.5
        %v394 = vmul.f32 %v386, 0.5
        %v395 = vmul.f32 %v387, 0.5
        %s396 = sadd.s32 %s25, %s26
        %s397 = smul.u32 %s396, 8
        %v398 = vlaneseq
        %v399 = vshrl.u32 %v398, 7
        %v400 = vstv %s397
        %v401 = vadd.s32 %v400, %v399
        %vm402 = vcmp.lt.s32.totalorder %v401, 2
        %v403 = vsel %vm402, %v388, 0.0
        %v404 = vsel %vm402, %v389, 0.0
        %v405 = vsel %vm402, %v390, 0.0
        %v406 = vsel %vm402, %v391, 0.0
        %v407 = vsel %vm402, %v392, 0.0
        %v408 = vsel %vm402, %v393, 0.0
        %v409 = vsel %vm402, %v394, 0.0
        %v410 = vsel %vm402, %v395, 0.0
        %v411 = vld [vmem:[#allocation2] sm:$0xff]
        %v412 = vld [vmem:[#allocation2 + $0x8] sm:$0xff]
        %v413 = vld [vmem:[#allocation2 + $0x10] sm:$0xff]
        %v414 = vld [vmem:[#allocation2 + $0x18] sm:$0xff]
        %v415 = vld [vmem:[#allocation2 + $0x20] sm:$0xff]
        %v416 = vld [vmem:[#allocation2 + $0x28] sm:$0xff]
        %v417 = vld [vmem:[#allocation2 + $0x30] sm:$0xff]
        %v418 = vld [vmem:[#allocation2 + $0x38] sm:$0xff]
        %v419 = vadd.f32 %v403, 0.0
        %v420 = vadd.f32 %v404, 0.0
        %v421 = vadd.f32 %v405, 0.0
        %v422 = vadd.f32 %v406, 0.0
        %v423 = vadd.f32 %v407, 0.0
        %v424 = vadd.f32 %v408, 0.0
        %v425 = vadd.f32 %v409, 0.0
        %v426 = vadd.f32 %v410, 0.0
        %v427 = vadd.f32 %v411, %v419
        %v428 = vadd.f32 %v412, %v420
        %v429 = vadd.f32 %v413, %v421
        %v430 = vadd.f32 %v414, %v422
        %v431 = vadd.f32 %v415, %v423
        %v432 = vadd.f32 %v416, %v424
        %v433 = vadd.f32 %v417, %v425
        %v434 = vadd.f32 %v418, %v426
        %435 = vst [vmem:[#allocation2] sm:$0xff] %v427
        %436 = vst [vmem:[#allocation2 + $0x8] sm:$0xff] %v428
        %437 = vst [vmem:[#allocation2 + $0x10] sm:$0xff] %v429
        %438 = vst [vmem:[#allocation2 + $0x18] sm:$0xff] %v430
        %439 = vst [vmem:[#allocation2 + $0x20] sm:$0xff] %v431
        %440 = vst [vmem:[#allocation2 + $0x28] sm:$0xff] %v432
        %441 = vst [vmem:[#allocation2 + $0x30] sm:$0xff] %v433
        %442 = vst [vmem:[#allocation2 + $0x38] sm:$0xff] %v434
        // Predicated region
        $region49: #{tpu_custom_call.1} parent=31 // pred_check
          %p443 = pneg %p228
        $region50: #{tpu_custom_call.1} parent=31 // pred_check_branch
          %445 = sbr.rel (%p443) target = $region52
        $region51: #{tpu_custom_call.1} parent=31 // pred_region
          %v446 = vld [vmem:[#allocation2] sm:$0xff]
          %v447 = vld [vmem:[#allocation2 + $0x8] sm:$0xff]
          %v448 = vld [vmem:[#allocation2 + $0x10] sm:$0xff]
          %v449 = vld [vmem:[#allocation2 + $0x18] sm:$0xff]
          %v450 = vld [vmem:[#allocation2 + $0x20] sm:$0xff]
          %v451 = vld [vmem:[#allocation2 + $0x28] sm:$0xff]
          %v452 = vld [vmem:[#allocation2 + $0x30] sm:$0xff]
          %v453 = vld [vmem:[#allocation2 + $0x38] sm:$0xff]
          %v454 = vadd.f32 %v446, %v447
          %v455 = vadd.f32 %v454, %v448
          %v456 = vadd.f32 %v455, %v449
          %v457 = vadd.f32 %v456, %v450
          %v458 = vadd.f32 %v457, %v451
          %v459 = vadd.f32 %v458, %v452
          %v460 = vadd.f32 %v459, %v453
          %461 = vadd.xlane.f32.xlu0 %v460
          %v462 = vpop.xlane.xlu0 %461
          %v463 = vrot.slane %v462, 4
          %v464 = vadd.f32 %v462, %v463
          %v465 = vrot.slane %v464, 2
          %v466 = vadd.f32 %v464, %v465
          %v467 = vrot.slane %v466, 1
          %v468 = vadd.f32 %v466, %v467
          %s469 = vtos %v468
          %v470 = vstv %s469
          %471 = vst [vmem:[%s226] sm:$0xff] %v470
        $region52: #{tpu_custom_call.1} parent=31 // pred_fallthru
          _
        %s472 = sand.u32 %s111, 1
        %s473 = scalar_lea.sflag [#allocation5], %s472
        %s474 = sand.u32 %s111, 1
        %s475 = smul.addr %s474, 8
        %s476 = scalar_lea.vmem [#allocation9], %s475
        // Predicated region
        $region53: #{tpu_custom_call.1} parent=31 // pred_check
          %p477 = pneg %p121
        $region54: #{tpu_custom_call.1} parent=31 // pred_check_branch
          %479 = sbr.rel (%p477) target = $region56
        $region55: #{tpu_custom_call.1} parent=31 // pred_region
          %s481 = ssub.s32 128, 128
          %482 = vsyncadd %s473, %s481
          %s483 = smul.addr %s25, 128
          %s484 = scalar_lea.hbm %s3, %s483
          %s486 = sshll.u32 %s476, 4
          %s487 = int_to_ptr.vmem [resolvable:$true] %s486
          %489 = dma.vmem_to_hbm [thread:$0]  %s487, 128, %s484, %s473
        $region56: #{tpu_custom_call.1} parent=31 // pred_fallthru
          _
      $region32: #{tpu_custom_call.1} parent=5 // pred_fallthru
        _
      %p490 = scmp.le.s32.totalorder 2, %s16
      // Predicated region
      $region57: #{tpu_custom_call.1} parent=5 // pred_check
        %p491 = pneg %p490
      $region58: #{tpu_custom_call.1} parent=5 // pred_check_branch
        %493 = sbr.rel (%p491) target = $region60
      $region59: #{tpu_custom_call.1} parent=5 // pred_region
        %s494 = ssub.s32 %s16, 2
        // Predicated region
        $region61: #{tpu_custom_call.1} parent=59 // pred_check
          %p495 = pneg %p127
        $region62: #{tpu_custom_call.1} parent=59 // pred_check_branch
          %497 = sbr.rel (%p495) target = $region64
        $region63: #{tpu_custom_call.1} parent=59 // pred_region
          %s498 = sand.u32 %s112, 1
          %s499 = scalar_lea.sflag [#allocation5], %s498
          %s500 = sand.u32 %s112, 1
          %s501 = smul.addr %s500, 8
          %s502 = scalar_lea.vmem [#allocation9], %s501
          %503 = dma.done %s499, 128
        $region64: #{tpu_custom_call.1} parent=59 // pred_fallthru
          _
      $region60: #{tpu_custom_call.1} parent=5 // pred_fallthru
        _
    $region6: #{tpu_custom_call.1} parent=1 // loop_footer
      %s20 = sadd.s32 1, %s16
    $region7: #{tpu_custom_call.1} parent=1 // loop_footer_branch
      %15 = sbr.rel target = $region3
    $region8: #{tpu_custom_call.1} parent=1 // loop_exit
      _
    %504 = vsyncpa [#allocation4], 1
    %s505 = scalar_lea.sflag [#allocation4], 1
    %506 = vsyncpa %s505, 1
    %507 = vsyncpa [#allocation7], 1
    %508 = vsyncpa [#allocation5], 1
    %s509 = scalar_lea.sflag [#allocation5], 1
    %510 = vsyncpa %s509, 1

</llo_original>
